<compile_context>
chip_gen: v7x
topology: tpu7x:2x2x1
jax: 0.10.0
libtpu: 0.0.40
codegen_flags: <defaults>
</compile_context>

<pallas_src>
import jax
import jax.numpy as jnp
from jax.experimental import pallas as pl
from jax.experimental.pallas import tpu as pltpu


def _round_up(x, m):
    return ((x + m - 1) // m) * m


def _orthogonal(key, n):
    """Deterministic orthogonal matrix standing in for an interferometer unitary."""
    a = jax.random.normal(key, (n, n), dtype=jnp.float32)
    q, r = jnp.linalg.qr(a)
    d = jnp.sign(jnp.diagonal(r))
    d = jnp.where(d == 0, 1.0, d)  # robust against exact-zero diagonal entries
    return q * d[None, :]


def seg_optical_kernel(x_ref, w_ref, o_ref):
    # Single fused matmul: bf16 operands, f32 accumulation on the MXU.
    o_ref[...] = jnp.dot(
        x_ref[...], w_ref[...], preferred_element_type=jnp.float32
    ).astype(o_ref.dtype)


class SegmentedOpticalLayerPallas:
    def __init__(self, in_features, out_features, device_max_inputs=16,
                 num_modes=None, key=None, compute_dtype=jnp.bfloat16):
        if key is None:
            key = jax.random.PRNGKey(0)
        self.in_features = in_features
        self.out_features = out_features
        self.device_max_inputs = device_max_inputs
        self.compute_dtype = compute_dtype

        self.num_segments = (in_features + device_max_inputs - 1) // device_max_inputs
        self.segment_out_features = min(
            device_max_inputs,
            (out_features + self.num_segments - 1) // self.num_segments)
        total_intermediate = self.num_segments * self.segment_out_features
        self.total_intermediate = total_intermediate

        keys = jax.random.split(key, self.num_segments + 1)

        # Block-diagonal W1: slice -> per-segment optical layer -> concat.
        w1 = jnp.zeros((in_features, total_intermediate), dtype=jnp.float32)
        for i in range(self.num_segments):
            seg_in = min(device_max_inputs, in_features - i * device_max_inputs)
            seg_modes = max(seg_in, self.segment_out_features)
            if num_modes is not None:
                seg_modes = max(seg_modes, num_modes)
            u = _orthogonal(keys[i], seg_modes)
            w_eff = u[:seg_in, :self.segment_out_features]
            r0 = i * device_max_inputs
            c0 = i * self.segment_out_features
            w1 = w1.at[r0:r0 + seg_in,
                       c0:c0 + self.segment_out_features].set(w_eff)
        self.w1 = w1

        # Optional output_transform (OpticalLinearLayer) -> W2, else identity.
        if total_intermediate != out_features:
            final_modes = max(total_intermediate, out_features)
            if num_modes is not None:
                final_modes = max(final_modes, num_modes)
            u = _orthogonal(keys[-1], final_modes)
            self.w2 = u[:total_intermediate, :out_features]
        else:
            self.w2 = jnp.eye(total_intermediate, dtype=jnp.float32)

        # Fuse the two static matmuls and zero-pad columns to a lane-dense
        # width (multiple of 128).  Padding columns are zero -> sliced away.
        w_fused = self.w1 @ self.w2                       # (in, out_features), f32
        self.out_padded = max(128, _round_up(out_features, 128))
        w_fused = jnp.pad(
            w_fused, ((0, 0), (0, self.out_padded - out_features)))
        self.w_fused_f32 = w_fused
        self.w_fused = w_fused.astype(compute_dtype)

        # dummy_parameter kept for structural fidelity; `+ 0 * dummy` is a
        # numerical no-op and is not executed in the kernel.
        self.dummy = jnp.zeros((1,), dtype=jnp.float32)

    def __call__(self, x, tile_b=512):
        batch = x.shape[0]
        # Batch tile: multiple of 8 (sublane), capped at `tile_b`.
        tb = min(_round_up(tile_b, 8), _round_up(batch, 8))
        padded_batch = _round_up(batch, tb)

        xb = x.astype(self.compute_dtype)
        if padded_batch != batch:
            xb = jnp.pad(xb, ((0, padded_batch - batch), (0, 0)))

        grid = (padded_batch // tb,)
        out = pl.pallas_call(
            seg_optical_kernel,
            out_shape=jax.ShapeDtypeStruct((padded_batch, self.out_padded),
                                           x.dtype),
            grid=grid,
            in_specs=[
                # x: one batch tile per grid step (pipelined HBM -> VMEM).
                pl.BlockSpec((tb, self.in_features), lambda i: (i, 0)),
                # fused W: resident in VMEM across all grid iterations.
                pl.BlockSpec((self.in_features, self.out_padded),
                             lambda i: (0, 0)),
            ],
            out_specs=pl.BlockSpec((tb, self.out_padded), lambda i: (i, 0)),
            compiler_params=pltpu.CompilerParams(
                dimension_semantics=("parallel",)),
        )(xb, self.w_fused)

        return out[:batch, :self.out_features]

    def reference(self, x):
        """Pure-JAX f32 reference mirroring the PyTorch forward loop."""
        seg_outs = []
        col = 0
        for i in range(self.num_segments):
            s = i * self.device_max_inputs
            e = min((i + 1) * self.device_max_inputs, self.in_features)
            w_seg = self.w1[s:e, col:col + self.segment_out_features]
            seg_outs.append(x[:, s:e] @ w_seg)
            col += self.segment_out_features
        combined = jnp.concatenate(seg_outs, axis=1)
        combined = combined @ self.w2
        combined = combined + 0.0 * self.dummy[0]
        return combined[:, :self.out_features]

    def reference_quantized(self, x):
        """Reference using the same bf16-quantized fused weights as the kernel."""
        xq = x.astype(self.compute_dtype).astype(jnp.float32)
        wq = self.w_fused.astype(jnp.float32)
        return (xq @ wq)[:, :self.out_features]


if __name__ == "__main__":
    # in=40, out=20, device_max_inputs=16 -> 3 segments, segment_out=7,
    # total_intermediate=21 != 20 -> output_transform path is exercised.
    batch, in_features, out_features, dmi = 8, 40, 20, 16

    key = jax.random.PRNGKey(0)
    k_param, k_x = jax.random.split(key)

    layer = SegmentedOpticalLayerPallas(in_features, out_features,
                                        device_max_inputs=dmi, key=k_param)
    x = jax.random.normal(k_x, (batch, in_features), dtype=jnp.float32)

    out = layer(x)
    out = jax.block_until_ready(out)

    assert out.shape == (batch, out_features), out.shape

    # Tight check vs. a reference that uses the same bf16-quantized fused
    # weights (only accumulation-order differences remain).
    ref_q = layer.reference_quantized(x)
    assert jnp.allclose(out, ref_q, atol=1e-3, rtol=1e-3), "mismatch vs quantized ref"

    # Structural check vs. the full-precision chained reference (loose
    # tolerance accounts for bf16 input/weight quantization).
    ref = layer.reference(x)
    assert jnp.allclose(out, ref, atol=5e-2, rtol=5e-2), "mismatch vs f32 reference"

    print("KERNEL_OK")
</pallas_src>

<mosaic_0001>
module attributes {stable_mosaic.version = 11 : i64} {
  func.func @seg_optical_kernel(%arg0: i32, %arg1: memref<8x40xbf16, #tpu.memory_space<vmem>>, %arg2: memref<40x128xbf16, #tpu.memory_space<vmem>>, %arg3: memref<8x128xf32, #tpu.memory_space<vmem>>) attributes {dimension_semantics = [#tpu.dimension_semantics<parallel>], iteration_bounds = array<i64: 1>, scalar_prefetch = 0 : i64, scratch_operands = 0 : i64, tpu.core_type = #tpu.core_type<tc>, window_params = [{transform_indices = @transform_0, window_bounds = array<i64: 8, 40>}, {pipeline_mode = #tpu.pipeline_mode<synchronous>, transform_indices = @transform_1, window_bounds = array<i64: 40, 128>}, {transform_indices = @transform_2, window_bounds = array<i64: 8, 128>}]} {
    %c0 = arith.constant 0 : index
    %c0_0 = arith.constant 0 : index
    %0 = vector.load %arg1[%c0, %c0_0] : memref<8x40xbf16, #tpu.memory_space<vmem>>, vector<8x40xbf16>
    %c0_1 = arith.constant 0 : index
    %c0_2 = arith.constant 0 : index
    %1 = vector.load %arg2[%c0_1, %c0_2] : memref<40x128xbf16, #tpu.memory_space<vmem>>, vector<40x128xbf16>
    %cst = arith.constant dense<0.000000e+00> : vector<8x128xf32>
    %2 = tpu.matmul %0, %1, %cst {dimension_numbers = #tpu.dot_dimension_numbers<[1], [0], [0], [1], [0, 0, 1, 1], [], []>} : vector<8x40xbf16>, vector<40x128xbf16>, vector<8x128xf32> -> vector<8x128xf32>
    %c0_3 = arith.constant 0 : index
    %c0_4 = arith.constant 0 : index
    %3 = vector.load %arg3[%c0_3, %c0_4] : memref<8x128xf32, #tpu.memory_space<vmem>>, vector<8x128xf32>
    tpu.vector_store %arg3[%c0_3, %c0_4], %2 {strides = array<i32>} : memref<8x128xf32, #tpu.memory_space<vmem>>, vector<8x128xf32>,
    return
  }
  func.func @transform_0(%arg0: i32) -> (i32, i32) {
    %c0_i32 = arith.constant 0 : i32
    %c0_i32_0 = arith.constant 0 : i32
    return %arg0, %c0_i32 : i32, i32
  }
  func.func @transform_1(%arg0: i32) -> (i32, i32) {
    %c0_i32 = arith.constant 0 : i32
    %c0_i32_0 = arith.constant 0 : i32
    %c0_i32_1 = arith.constant 0 : i32
    return %c0_i32, %c0_i32_0 : i32, i32
  }
  func.func @transform_2(%arg0: i32) -> (i32, i32) {
    %c0_i32 = arith.constant 0 : i32
    %c0_i32_0 = arith.constant 0 : i32
    return %arg0, %c0_i32 : i32, i32
  }
}

</mosaic_0001>

<llo_original>
// kernel: tpu_custom_call.1
$region0: #{tpu_custom_call.1}
  #allocation0 [shape = 'u32[]', space=smem, size = 0x4, offset = 0x4, fixed_abs, tag = 'smem constant byte address 0x4 - core index']
  #allocation1 [shape = 'u32[144,128]{1,0:T(1,128)}', space=vmem, size = 0x12000, scoped, tag = 'internal scratch']
  %s0 = inlined_call_operand.hbm [shape: bf16[8,40], index: 0, kind: input, shape index: {}]
  %s1 = inlined_call_operand.hbm [shape: bf16[40,128], index: 1, kind: input, shape index: {}]
  %s2 = inlined_call_operand.hbm [shape: f32[8,128], index: 2, kind: output, shape index: {}]
  %s3 = sld [smem:[#allocation0]]
  $region26: #{tpu_custom_call.1} parent=0
    _
  %s5 = ssub.s32 1, %s3
  %s6 = scalar_select 0, %s5, %s3
  $region1: #{tpu_custom_call.1} parent=0
    #allocation2 [shape = 'u8[2048]{0}', space=vmem, size = 0x800, scoped, tag = 'input window, operand 0, single buffered']
    #allocation3 [shape = 's32[1]{0}', space=sflag, size = 0x4, scoped, tag = 'scoped memory for tpu_custom_call.1']
    #allocation4 [shape = 's32[1]{0}', space=sflag, size = 0x4, scoped, tag = 'scoped memory for tpu_custom_call.1']
    #allocation5 [shape = 'u8[10240]{0}', space=vmem, size = 0x2800, scoped, tag = 'input window, operand 1, single buffered']
    #allocation6 [shape = 's32[1]{0}', space=sflag, size = 0x4, scoped, tag = 'scoped memory for tpu_custom_call.1']
    #allocation7 [shape = 'u8[4096]{0}', space=vmem, size = 0x1000, scoped, tag = 'output window, operand 0, single buffered']
    %7 = vsyncpa [#allocation3], 0
    %8 = vsyncpa [#allocation6], 0
    %9 = vsyncpa [#allocation4], 0
    // Predicated region
    $region2: #{tpu_custom_call.1} parent=1 // pred_check
      _
    $region3: #{tpu_custom_call.1} parent=1 // pred_check_branch
      %11 = sbr.rel (0) target = $region5
    $region4: #{tpu_custom_call.1} parent=1 // pred_region
      %s13 = ssub.s32 64, 64
      %14 = vsyncadd [#allocation3], %s13
      %s16 = sshll.u32 [#allocation2], 4
      %s17 = int_to_ptr.vmem [resolvable:$true] %s16
      %19 = dma.hbm_to_vmem [thread:$0]  %s0, 64, %s17, [#allocation3]
    $region5: #{tpu_custom_call.1} parent=1 // pred_fallthru
      _
    // Predicated region
    $region6: #{tpu_custom_call.1} parent=1 // pred_check
      _
    $region7: #{tpu_custom_call.1} parent=1 // pred_check_branch
      %21 = sbr.rel (0) target = $region9
    $region8: #{tpu_custom_call.1} parent=1 // pred_region
      %s23 = ssub.s32 320, 320
      %24 = vsyncadd [#allocation6], %s23
      %s25 = sshll.u32 [#allocation5], 4
      %s26 = int_to_ptr.vmem [resolvable:$true] %s25
      %31 = dma.hbm_to_vmem [thread:$0]  %s1, 320, %s26, [#allocation6], 64, 64, 4
    $region9: #{tpu_custom_call.1} parent=1 // pred_fallthru
      _
    // Predicated region
    $region10: #{tpu_custom_call.1} parent=1 // pred_check
      _
    $region11: #{tpu_custom_call.1} parent=1 // pred_check_branch
      %33 = sbr.rel (0) target = $region13
    $region12: #{tpu_custom_call.1} parent=1 // pred_region
      %34 = dma.done [#allocation3], 64
    $region13: #{tpu_custom_call.1} parent=1 // pred_fallthru
      _
    // Predicated region
    $region14: #{tpu_custom_call.1} parent=1 // pred_check
      _
    $region15: #{tpu_custom_call.1} parent=1 // pred_check_branch
      %36 = sbr.rel (0) target = $region17
    $region16: #{tpu_custom_call.1} parent=1 // pred_region
      %37 = dma.done [#allocation6], 320
    $region17: #{tpu_custom_call.1} parent=1 // pred_fallthru
      _
    %v39 = vld [vmem:[#allocation2] sm:$0xf]
    %v40 = vld [vmem:[#allocation5] sm:$0xf]
    %v41 = vld [vmem:[#allocation5 + $0x4] sm:$0xf]
    %v42 = vld [vmem:[#allocation5 + $0x8] sm:$0xf]
    %v43 = vld [vmem:[#allocation5 + $0xc] sm:$0xf]
    %v44 = vld [vmem:[#allocation5 + $0x10] sm:$0xf]
    %v50 = vunpack.c.l.b16 %v40
    %v51 = vunpack.c.l.b16 %v41
    %v52 = vunpack.c.l.b16 %v42
    %v53 = vunpack.c.l.b16 %v43
    %v54 = vunpack.c.l.b16 %v44
    %v55 = vpack.c.b16 %v51, %v50
    %v56 = vpack.c.b16 %v53, %v52
    %v57 = vpack.c.b16 %v54, %v54
    %vm60 = vcmask 326656
    %v62 = vsel %vm60, %v39, 0
    %vm64 = vcmask 1043456
    %v66 = vsel %vm64, %v57, 0
    %68 = vmatprep.subr.bf16.mxu0 0
    %69 = vmatpush1.bf16.msra.mxu0 %v55
    %70 = vmatprep.subr.bf16.mxu0 0
    %71 = vmatpush1.bf16.msra.mxu0 %v56
    %72 = vmatprep.subr.bf16.mxu0 0
    %73 = vmatpush1.bf16.msra.mxu0 %v66
    %74 = vmatprep.subr.bf16.mxu0 0
    %75 = vmatpush1.bf16.msra.mxu0 0
    %76 = vmatprep.subr.bf16.mxu0 0
    %77 = vmatpush1.bf16.msra.mxu0 0
    %78 = vmatprep.subr.bf16.mxu0 0
    %79 = vmatpush1.bf16.msra.mxu0 0
    %80 = vmatprep.subr.bf16.mxu0 0
    %81 = vmatpush1.bf16.msra.mxu0 0
    %82 = vmatprep.subr.bf16.mxu0 0
    %83 = vmatpush1.bf16.msra.mxu0 0
    %84 = vmatprep.subr.bf16.mxu0 0
    %85 = vmatpush1.bf16.msra.mxu0 0
    %86 = vmatprep.subr.bf16.mxu0 0
    %87 = vmatpush1.bf16.msra.mxu0 0
    %88 = vmatprep.subr.bf16.mxu0 0
    %89 = vmatpush1.bf16.msra.mxu0 0
    %90 = vmatprep.subr.bf16.mxu0 0
    %91 = vmatpush1.bf16.msra.mxu0 0
    %92 = vmatprep.subr.bf16.mxu0 0
    %93 = vmatpush1.bf16.msra.mxu0 0
    %94 = vmatprep.subr.bf16.mxu0 0
    %95 = vmatpush1.bf16.msra.mxu0 0
    %96 = vmatprep.subr.bf16.mxu0 0
    %97 = vmatpush1.bf16.msra.mxu0 0
    %98 = vmatprep.subr.bf16.mxu0 0
    %99 = vmatpush1.bf16.msra.mxu0 0
    %100 = vmatprep.mubr.bf16.mxu0 0
    %101 = vmatmul.mubr.bf16.gmra.mrb[0].mxu0 %v62
    %v102 = vpop.f32.mrb[0].mxu0
    %v103 = vadd.f32 0.0, %v102
    %v104 = vpop.f32.mrb[0].mxu0
    %v105 = vpop.f32.mrb[0].mxu0
    %v106 = vpop.f32.mrb[0].mxu0
    %107 = vdwg.mxu0
    %108 = vst [vmem:[#allocation7] sm:$0xff] %v103
    // Predicated region
    $region18: #{tpu_custom_call.1} parent=1 // pred_check
      _
    $region19: #{tpu_custom_call.1} parent=1 // pred_check_branch
      %110 = sbr.rel (0) target = $region21
    $region20: #{tpu_custom_call.1} parent=1 // pred_region
      %s112 = ssub.s32 128, 128
      %113 = vsyncadd [#allocation4], %s112
      %s115 = sshll.u32 [#allocation7], 4
      %s116 = int_to_ptr.vmem [resolvable:$true] %s115
      %118 = dma.vmem_to_hbm [thread:$0]  %s116, 128, %s2, [#allocation4]
    $region21: #{tpu_custom_call.1} parent=1 // pred_fallthru
      _
    // Predicated region
    $region22: #{tpu_custom_call.1} parent=1 // pred_check
      _
    $region23: #{tpu_custom_call.1} parent=1 // pred_check_branch
      %120 = sbr.rel (0) target = $region25
    $region24: #{tpu_custom_call.1} parent=1 // pred_region
      %121 = dma.done [#allocation4], 128
    $region25: #{tpu_custom_call.1} parent=1 // pred_fallthru
      _
    %122 = vsyncpa [#allocation3], 1
    %123 = vsyncpa [#allocation6], 1
    %124 = vsyncpa [#allocation4], 1

</llo_original>
